<compile_context>
chip_gen: v5e
topology: v5e:2x2
jax: 0.10.0
libtpu: 0.0.40
codegen_flags: <defaults>
</compile_context>

<pallas_src>
import functools
import math

import jax
import jax.numpy as jnp
from jax import lax
from jax.experimental import pallas as pl
from jax.experimental.pallas import tpu as pltpu


def _mha_kernel(x_ref, w_ref, o_ref, *, num_heads, head_dim):
    # Block shapes:
    #   x_ref : (1, T, d_in)          bf16   -- one batch element
    #   w_ref : (d_in, 3*H*d_out)     bf16   -- fused [Wq*scale | Wk | Wv], head-major
    #   o_ref : (1, T, H*d_out)       f32    -- lane-dense head-concatenated output
    x = x_ref[0]                                                    # (T, d_in)

    # One fused QKV projection for all heads on the MXU, f32 accumulation.
    qkv = jnp.dot(x, w_ref[...], preferred_element_type=jnp.float32)  # (T, 3*H*D)

    t = qkv.shape[0]
    hd = num_heads * head_dim

    # Causal mask built once per batch tile (cheap at this T; for large T it
    # would be derived from q/kv tile ids in a flash-style kernel).
    row = lax.broadcasted_iota(jnp.int32, (t, t), 0)
    col = lax.broadcasted_iota(jnp.int32, (t, t), 1)
    causal = col > row                         # True above diagonal -> mask out
    neg = jnp.float32(-1e30)                   # finite sentinel: no NaN on padded rows

    ctxs = []
    for h in range(num_heads):                 # static unroll (H is small)
        q = qkv[:, h * head_dim:(h + 1) * head_dim].astype(jnp.bfloat16)
        k = qkv[:, hd + h * head_dim: hd + (h + 1) * head_dim].astype(jnp.bfloat16)
        v = qkv[:, 2 * hd + h * head_dim: 2 * hd + (h + 1) * head_dim].astype(jnp.bfloat16)

        # Contract last dims of q and k directly — no explicit transpose.
        s = lax.dot_general(q, k, (((1,), (1,)), ((), ())),
                            preferred_element_type=jnp.float32)    # (T, T)
        s = jnp.where(causal, neg, s)          # 1/sqrt(d_out) already folded into Wq

        # Numerically-stable softmax (f32).
        m = jnp.max(s, axis=-1, keepdims=True)
        e = jnp.exp(s - m)
        denom = jnp.sum(e, axis=-1, keepdims=True)
        attn = e * pl.reciprocal(denom, approx=True)               # EUP vrcp

        ctx = jnp.dot(attn.astype(jnp.bfloat16), v,
                      preferred_element_type=jnp.float32)          # (T, D)
        ctxs.append(ctx)

    # Single lane-dense store of the head-concatenated output (== torch.cat dim=-1).
    o_ref[0] = jnp.concatenate(ctxs, axis=-1).astype(o_ref.dtype)


@jax.jit
def multi_head_attention(x, wq, wk, wv):
    """x: (B, T, d_in); wq/wk/wv: (H, d_in, d_out)  ->  (B, T, H*d_out)."""
    B, T, d_in = x.shape
    H, _, d_out = wq.shape

    def stack(w):  # (H, d_in, d_out) -> (d_in, H*d_out), head-major along lanes
        return jnp.transpose(w, (1, 0, 2)).reshape(d_in, H * d_out)

    # Fold the softmax scale into W_q; fuse Q, K, V (and all heads) into one
    # wide weight so the projection is a single MXU matmul per batch tile.
    w_fused = jnp.concatenate(
        [stack(wq) * jnp.float32(1.0 / math.sqrt(d_out)), stack(wk), stack(wv)],
        axis=-1,
    ).astype(jnp.bfloat16)                                          # (d_in, 3*H*d_out)
    x_bf = x.astype(jnp.bfloat16)

    kernel = functools.partial(_mha_kernel, num_heads=H, head_dim=d_out)

    return pl.pallas_call(
        kernel,
        out_shape=jax.ShapeDtypeStruct((B, T, H * d_out), jnp.float32),
        grid_spec=pltpu.PrefetchScalarGridSpec(
            num_scalar_prefetch=0,
            grid=(B,),
            in_specs=[
                pl.BlockSpec((1, T, d_in), lambda b: (b, 0, 0)),
                pl.BlockSpec((d_in, 3 * H * d_out), lambda b: (0, 0)),
            ],
            out_specs=pl.BlockSpec((1, T, H * d_out), lambda b: (b, 0, 0)),
        ),
        compiler_params=pltpu.CompilerParams(
            dimension_semantics=("parallel",)),
    )(x_bf, w_fused)


def reference(x, wq, wk, wv):
    """Pure-JAX f32 reference matching the PyTorch forward (eval mode)."""
    B, T, d_in = x.shape
    H, _, d_out = wq.shape
    mask = jnp.triu(jnp.ones((T, T), dtype=bool), k=1)
    outs = []
    for h in range(H):
        q = x @ wq[h]
        k = x @ wk[h]
        v = x @ wv[h]
        s = jnp.einsum('btd,bsd->bts', q, k)
        s = jnp.where(mask[None], -jnp.inf, s)
        w = jax.nn.softmax(s / math.sqrt(d_out), axis=-1)
        outs.append(w @ v)
    return jnp.concatenate(outs, axis=-1)


if __name__ == "__main__":
    # Config consistent with the module:
    #   d_in=32, d_out=16, context_length=8 (= seq len), dropout=0.0, num_heads=2
    B, T, d_in, d_out, H = 2, 8, 32, 16, 2

    key = jax.random.PRNGKey(0)
    kx, kq, kk, kv = jax.random.split(key, 4)

    x = jax.random.normal(kx, (B, T, d_in), dtype=jnp.float32)

    # nn.Linear default init ~ U(-1/sqrt(d_in), 1/sqrt(d_in)); deterministic here.
    bound = 1.0 / math.sqrt(d_in)
    wq = jax.random.uniform(kq, (H, d_in, d_out), jnp.float32, -bound, bound)
    wk = jax.random.uniform(kk, (H, d_in, d_out), jnp.float32, -bound, bound)
    wv = jax.random.uniform(kv, (H, d_in, d_out), jnp.float32, -bound, bound)

    out = multi_head_attention(x, wq, wk, wv)
    out = jax.block_until_ready(out)

    ref = reference(x, wq, wk, wv)
    assert out.shape == (B, T, H * d_out), out.shape
    # bf16 MXU inputs (f32 accumulation) => relaxed tolerance vs. the f32 reference.
    assert jnp.allclose(out, ref, atol=5e-2, rtol=5e-2), "mismatch vs reference"

    print("KERNEL_OK")
</pallas_src>

<mosaic_0001>
module attributes {stable_mosaic.version = 11 : i64} {
  func.func @_mha_kernel(%arg0: i32, %arg1: memref<1x8x32xbf16, #tpu.memory_space<vmem>>, %arg2: memref<32x96xbf16, #tpu.memory_space<vmem>>, %arg3: memref<1x8x32xf32, #tpu.memory_space<vmem>>) attributes {dimension_semantics = [#tpu.dimension_semantics<parallel>], iteration_bounds = array<i64: 2>, scalar_prefetch = 0 : i64, scratch_operands = 0 : i64, tpu.core_type = #tpu.core_type<tc>, window_params = [{transform_indices = @transform_0, window_bounds = array<i64: 1, 8, 32>}, {pipeline_mode = #tpu.pipeline_mode<synchronous>, transform_indices = @transform_1, window_bounds = array<i64: 32, 96>}, {transform_indices = @transform_2, window_bounds = array<i64: 1, 8, 32>}]} {
    %c0 = arith.constant 0 : index
    %c0_0 = arith.constant 0 : index
    %c0_1 = arith.constant 0 : index
    %0 = vector.load %arg1[%c0, %c0_0, %c0_1] : memref<1x8x32xbf16, #tpu.memory_space<vmem>>, vector<1x8x32xbf16>
    %1 = vector.shape_cast %0 : vector<1x8x32xbf16> to vector<8x32xbf16>
    %c0_2 = arith.constant 0 : index
    %c0_3 = arith.constant 0 : index
    %2 = vector.load %arg2[%c0_2, %c0_3] : memref<32x96xbf16, #tpu.memory_space<vmem>>, vector<32x96xbf16>
    %cst = arith.constant dense<0.000000e+00> : vector<8x96xf32>
    %3 = tpu.matmul %1, %2, %cst {dimension_numbers = #tpu.dot_dimension_numbers<[1], [0], [0], [1], [0, 0, 1, 1], [], []>} : vector<8x32xbf16>, vector<32x96xbf16>, vector<8x96xf32> -> vector<8x96xf32>
    %4 = tpu.iota {dimensions = array<i32: 0>} : vector<8x8xi32>
    %5 = tpu.iota {dimensions = array<i32: 1>} : vector<8x8xi32>
    %6 = arith.cmpi sgt, %5, %4 : vector<8x8xi32>
    %7 = vector.extract_strided_slice %3 {offsets = [0, 0], sizes = [8, 16], strides = [1, 1]} : vector<8x96xf32> to vector<8x16xf32>
    %8 = arith.truncf %7 : vector<8x16xf32> to vector<8x16xbf16>
    %9 = vector.extract_strided_slice %3 {offsets = [0, 32], sizes = [8, 16], strides = [1, 1]} : vector<8x96xf32> to vector<8x16xf32>
    %10 = arith.truncf %9 : vector<8x16xf32> to vector<8x16xbf16>
    %11 = vector.extract_strided_slice %3 {offsets = [0, 64], sizes = [8, 16], strides = [1, 1]} : vector<8x96xf32> to vector<8x16xf32>
    %12 = arith.truncf %11 : vector<8x16xf32> to vector<8x16xbf16>
    %cst_4 = arith.constant dense<0.000000e+00> : vector<8x8xf32>
    %13 = tpu.matmul %8, %10, %cst_4 {dimension_numbers = #tpu.dot_dimension_numbers<[1], [1], [0], [0], [0, 0, 1, 0], [], []>} : vector<8x16xbf16>, vector<8x16xbf16>, vector<8x8xf32> -> vector<8x8xf32>
    %cst_5 = arith.constant -1.000000e+30 : f32
    %14 = vector.broadcast %cst_5 : f32 to vector<8x8xf32>
    %15 = arith.select %6, %14, %13 : vector<8x8xi1>, vector<8x8xf32>
    %cst_6 = arith.constant dense<0xFF800000> : vector<8xf32>
    %16 = vector.multi_reduction <maximumf>, %15, %cst_6 [1] : vector<8x8xf32> to vector<8xf32>
    %17 = vector.shape_cast %16 : vector<8xf32> to vector<8x1xf32>
    %18 = vector.broadcast %17 : vector<8x1xf32> to vector<8x8xf32>
    %19 = arith.subf %15, %18 : vector<8x8xf32>
    %20 = math.exp %19 : vector<8x8xf32>
    %cst_7 = arith.constant dense<0.000000e+00> : vector<8xf32>
    %21 = vector.multi_reduction <add>, %20, %cst_7 [1] : vector<8x8xf32> to vector<8xf32>
    %22 = vector.shape_cast %21 : vector<8xf32> to vector<8x1xf32>
    %23 = tpu.reciprocal %22 {approx = true} : vector<8x1xf32> -> vector<8x1xf32>
    %24 = vector.broadcast %23 : vector<8x1xf32> to vector<8x8xf32>
    %25 = arith.mulf %20, %24 : vector<8x8xf32>
    %26 = arith.truncf %25 : vector<8x8xf32> to vector<8x8xbf16>
    %cst_8 = arith.constant dense<0.000000e+00> : vector<8x16xf32>
    %27 = tpu.matmul %26, %12, %cst_8 {dimension_numbers = #tpu.dot_dimension_numbers<[1], [0], [0], [1], [0, 0, 1, 1], [], []>} : vector<8x8xbf16>, vector<8x16xbf16>, vector<8x16xf32> -> vector<8x16xf32>
    %28 = vector.extract_strided_slice %3 {offsets = [0, 16], sizes = [8, 16], strides = [1, 1]} : vector<8x96xf32> to vector<8x16xf32>
    %29 = arith.truncf %28 : vector<8x16xf32> to vector<8x16xbf16>
    %30 = vector.extract_strided_slice %3 {offsets = [0, 48], sizes = [8, 16], strides = [1, 1]} : vector<8x96xf32> to vector<8x16xf32>
    %31 = arith.truncf %30 : vector<8x16xf32> to vector<8x16xbf16>
    %32 = vector.extract_strided_slice %3 {offsets = [0, 80], sizes = [8, 16], strides = [1, 1]} : vector<8x96xf32> to vector<8x16xf32>
    %33 = arith.truncf %32 : vector<8x16xf32> to vector<8x16xbf16>
    %cst_9 = arith.constant dense<0.000000e+00> : vector<8x8xf32>
    %34 = tpu.matmul %29, %31, %cst_9 {dimension_numbers = #tpu.dot_dimension_numbers<[1], [1], [0], [0], [0, 0, 1, 0], [], []>} : vector<8x16xbf16>, vector<8x16xbf16>, vector<8x8xf32> -> vector<8x8xf32>
    %cst_10 = arith.constant -1.000000e+30 : f32
    %35 = vector.broadcast %cst_10 : f32 to vector<8x8xf32>
    %36 = arith.select %6, %35, %34 : vector<8x8xi1>, vector<8x8xf32>
    %cst_11 = arith.constant dense<0xFF800000> : vector<8xf32>
    %37 = vector.multi_reduction <maximumf>, %36, %cst_11 [1] : vector<8x8xf32> to vector<8xf32>
    %38 = vector.shape_cast %37 : vector<8xf32> to vector<8x1xf32>
    %39 = vector.broadcast %38 : vector<8x1xf32> to vector<8x8xf32>
    %40 = arith.subf %36, %39 : vector<8x8xf32>
    %41 = math.exp %40 : vector<8x8xf32>
    %cst_12 = arith.constant dense<0.000000e+00> : vector<8xf32>
    %42 = vector.multi_reduction <add>, %41, %cst_12 [1] : vector<8x8xf32> to vector<8xf32>
    %43 = vector.shape_cast %42 : vector<8xf32> to vector<8x1xf32>
    %44 = tpu.reciprocal %43 {approx = true} : vector<8x1xf32> -> vector<8x1xf32>
    %45 = vector.broadcast %44 : vector<8x1xf32> to vector<8x8xf32>
    %46 = arith.mulf %41, %45 : vector<8x8xf32>
    %47 = arith.truncf %46 : vector<8x8xf32> to vector<8x8xbf16>
    %cst_13 = arith.constant dense<0.000000e+00> : vector<8x16xf32>
    %48 = tpu.matmul %47, %33, %cst_13 {dimension_numbers = #tpu.dot_dimension_numbers<[1], [0], [0], [1], [0, 0, 1, 1], [], []>} : vector<8x8xbf16>, vector<8x16xbf16>, vector<8x16xf32> -> vector<8x16xf32>
    %49 = tpu.concatenate %27, %48 in 1 : vector<8x16xf32>, vector<8x16xf32> -> vector<8x32xf32>
    %c0_14 = arith.constant 0 : index
    %c0_15 = arith.constant 0 : index
    %c0_16 = arith.constant 0 : index
    %50 = vector.load %arg3[%c0_14, %c0_15, %c0_16] : memref<1x8x32xf32, #tpu.memory_space<vmem>>, vector<1x8x32xf32>
    %51 = vector.shape_cast %50 : vector<1x8x32xf32> to vector<8x32xf32>
    %52 = vector.shape_cast %49 : vector<8x32xf32> to vector<1x8x32xf32>
    tpu.vector_store %arg3[%c0_14, %c0_15, %c0_16], %52 {strides = array<i32>} : memref<1x8x32xf32, #tpu.memory_space<vmem>>, vector<1x8x32xf32>,
    return
  }
  func.func @transform_0(%arg0: i32) -> (i32, i32, i32) {
    %c0_i32 = arith.constant 0 : i32
    %c0_i32_0 = arith.constant 0 : i32
    %c0_i32_1 = arith.constant 0 : i32
    return %arg0, %c0_i32, %c0_i32_0 : i32, i32, i32
  }
  func.func @transform_1(%arg0: i32) -> (i32, i32) {
    %c0_i32 = arith.constant 0 : i32
    %c0_i32_0 = arith.constant 0 : i32
    %c0_i32_1 = arith.constant 0 : i32
    return %c0_i32, %c0_i32_0 : i32, i32
  }
  func.func @transform_2(%arg0: i32) -> (i32, i32, i32) {
    %c0_i32 = arith.constant 0 : i32
    %c0_i32_0 = arith.constant 0 : i32
    %c0_i32_1 = arith.constant 0 : i32
    return %arg0, %c0_i32, %c0_i32_0 : i32, i32, i32
  }
}

</mosaic_0001>

<llo_original>
// kernel: multi_head_attention.1
$region0: #{multi_head_attention.1}
  #allocation0 [shape = 'u32[]', space=smem, size = 0x4, offset = 0x4, fixed_abs, tag = 'smem constant byte address 0x4 - core index']
  #allocation1 [shape = 'u32[72,128]{1,0:T(1,128)}', space=vmem, size = 0x9000, scoped, tag = 'internal scratch']
  %s0 = inlined_call_operand.vmem [shape: bf16[2,8,32], index: 0, kind: input, shape index: {}]
  %s1 = inlined_call_operand.vmem [shape: bf16[32,96], index: 1, kind: input, shape index: {}]
  %s2 = inlined_call_operand.hbm [shape: f32[2,8,32], index: 2, kind: output, shape index: {}]
  %s3 = sld [smem:[#allocation0]]
  $region41: #{multi_head_attention.1} parent=0
    _
  %s5 = ssub.s32 1, %s3
  %s6 = scalar_select 0, %s5, %s3
  $region1: #{multi_head_attention.1} parent=0
    #allocation2 [shape = 'u8[8192]{0}', space=vmem, size = 0x2000, scoped, tag = 'output window, operand 0']
    #allocation3 [shape = 's32[2]{0}', space=sflag, size = 0x8, scoped, tag = 'scoped memory for multi_head_attention.1']
    %7 = vsyncpa [#allocation3], 0
    %s8 = scalar_lea.sflag [#allocation3], 1
    %9 = vsyncpa %s8, 0
    loop: start=0, step=1, limit=4
    $region2: #{multi_head_attention.1} parent=1 // loop_pre_header
      _
    $region3: #{multi_head_attention.1} parent=1 // loop_header
      %s11 = sphi 0, %s15
      %p12 = scmp.ge.s32.totalorder %s11, 4
      %s21 = sphi 0, %s23
      %s24 = sphi 0, %s21
      %s25 = sphi 0, %s24
      %s41 = sphi 0, %s25
      %s45 = sphi 0, %s45
      %s47 = sphi 0, %s45
      %s48 = sphi 0, %s47
      %s62 = sphi 0, %s48
      %s68 = sphi 0, %s70
      %s71 = sphi 0, %s68
      %s72 = sphi 0, %s71
      %s88 = sphi 0, %s72
    $region4: #{multi_head_attention.1} parent=1 // loop_header_branch
      %14 = sbr.rel (%p12) target = $region8
    $region5: #{multi_head_attention.1} parent=1 // loop_body
      %s16 = ssub.s32 %s11, 1
      %s17 = ssub.s32 %s11, 2
      %s18 = sadd.s32 %s11, 1
      %s19 = ssub.s32 %s11, %s18
      %p20 = scmp.eq.s32.totalorder %s19, 0
      %s22 = sadd.s32 %s21, 1
      %s23 = scalar_select %p20, %s21, %s22
      %p26 = pneg %p20
      %p27 = scmp.eq.s32.totalorder %s11, 1
      %p28 = por %p26, %p27
      %p29 = scmp.ne.s32.totalorder %s21, %s24
      %p30 = scmp.eq.s32.totalorder %s11, 0
      %p31 = por %p29, %p30
      %p32 = scmp.ne.s32.totalorder %s21, %s24
      %p33 = scmp.eq.s32.totalorder %s16, 1
      %p34 = por %p32, %p33
      %p35 = scmp.ne.s32.totalorder %s24, %s25
      %p36 = scmp.eq.s32.totalorder %s16, 0
      %p37 = por %p35, %p36
      %p38 = scmp.ne.s32.totalorder %s24, %s25
      %p39 = scmp.eq.s32.totalorder %s17, 1
      %p40 = por %p38, %p39
      %p42 = scmp.ne.s32.totalorder %s25, %s41
      %p43 = scmp.eq.s32.totalorder %s17, 0
      %p44 = por %p42, %p43
      %s46 = sadd.s32 %s45, 1
      %p49 = scmp.eq.s32.totalorder %s11, 1
      %p50 = scmp.ne.s32.totalorder %s45, %s47
      %p51 = scmp.eq.s32.totalorder %s11, 0
      %p52 = por %p50, %p51
      %p53 = scmp.ne.s32.totalorder %s45, %s47
      %p54 = scmp.eq.s32.totalorder %s16, 1
      %p55 = por %p53, %p54
      %p56 = scmp.ne.s32.totalorder %s47, %s48
      %p57 = scmp.eq.s32.totalorder %s16, 0
      %p58 = por %p56, %p57
      %p59 = scmp.ne.s32.totalorder %s47, %s48
      %p60 = scmp.eq.s32.totalorder %s17, 1
      %p61 = por %p59, %p60
      %p63 = scmp.ne.s32.totalorder %s48, %s62
      %p64 = scmp.eq.s32.totalorder %s17, 0
      %p65 = por %p63, %p64
      %s66 = ssub.s32 %s11, %s18
      %p67 = scmp.eq.s32.totalorder %s66, 0
      %s69 = sadd.s32 %s68, 1
      %s70 = scalar_select %p67, %s68, %s69
      %p73 = pneg %p67
      %p74 = scmp.eq.s32.totalorder %s11, 1
      %p75 = por %p73, %p74
      %p76 = scmp.ne.s32.totalorder %s68, %s71
      %p77 = scmp.eq.s32.totalorder %s11, 0
      %p78 = por %p76, %p77
      %p79 = scmp.ne.s32.totalorder %s68, %s71
      %p80 = scmp.eq.s32.totalorder %s16, 1
      %p81 = por %p79, %p80
      %p82 = scmp.ne.s32.totalorder %s71, %s72
      %p83 = scmp.eq.s32.totalorder %s16, 0
      %p84 = por %p82, %p83
      %p85 = scmp.ne.s32.totalorder %s71, %s72
      %p86 = scmp.eq.s32.totalorder %s17, 1
      %p87 = por %p85, %p86
      %p89 = scmp.ne.s32.totalorder %s72, %s88
      %p90 = scmp.eq.s32.totalorder %s17, 0
      %p91 = por %p89, %p90
      %p92 = scmp.le.s32.totalorder 1, %s11
      %p93 = scmp.lt.s32.totalorder %s11, 3
      %p94 = pnand %p92, %p93
      %p95 = pneg %p94
      // Predicated region
      $region9: #{multi_head_attention.1} parent=5 // pred_check
        _
      $region10: #{multi_head_attention.1} parent=5 // pred_check_branch
        %97 = sbr.rel (%p94) target = $region12
      $region11: #{multi_head_attention.1} parent=5 // pred_region
        %s98 = ssub.s32 %s11, 1
        // Predicated region
        $region13: #{multi_head_attention.1} parent=11 // pred_check
          %p99 = pneg %p58
        $region14: #{multi_head_attention.1} parent=11 // pred_check_branch
          %101 = sbr.rel (%p99) target = $region16
        $region15: #{multi_head_attention.1} parent=11 // pred_region
          _
        $region16: #{multi_head_attention.1} parent=11 // pred_fallthru
          _
      $region12: #{multi_head_attention.1} parent=5 // pred_fallthru
        _
      %p102 = scmp.lt.s32.totalorder %s11, 2
      // Predicated region
      $region17: #{multi_head_attention.1} parent=5 // pred_check
        %p103 = pneg %p102
      $region18: #{multi_head_attention.1} parent=5 // pred_check_branch
        %105 = sbr.rel (%p103) target = $region20
      $region19: #{multi_head_attention.1} parent=5 // pred_region
        // Predicated region
        $region21: #{multi_head_attention.1} parent=19 // pred_check
          %p106 = pneg %p31
        $region22: #{multi_head_attention.1} parent=19 // pred_check_branch
          %108 = sbr.rel (%p106) target = $region24
        $region23: #{multi_head_attention.1} parent=19 // pred_region
          %p109 = scmp.lt.s32.totalorder %s11, 1
          %s110 = scalar_select %p109, %s11, 1
          %s111 = smul.addr %s110, 4
          %s112 = scalar_lea.vmem %s0, %s111
        $region24: #{multi_head_attention.1} parent=19 // pred_fallthru
          _
      $region20: #{multi_head_attention.1} parent=5 // pred_fallthru
        _
      %p113 = scmp.le.s32.totalorder 1, %s11
      %p114 = scmp.lt.s32.totalorder %s11, 3
      %p115 = pnand %p113, %p114
      %p116 = pneg %p115
      // Predicated region
      $region25: #{multi_head_attention.1} parent=5 // pred_check
        _
      $region26: #{multi_head_attention.1} parent=5 // pred_check_branch
        %118 = sbr.rel (%p115) target = $region28
      $region27: #{multi_head_attention.1} parent=5 // pred_region
        %s119 = ssub.s32 %s11, 1
        %p120 = scmp.lt.s32.totalorder %s16, 1
        %s121 = scalar_select %p120, %s16, 1
        %s122 = smul.addr %s121, 4
        %s123 = scalar_lea.vmem %s0, %s122
        %p124 = pneg %p37
        %p125 = pneg %p34
        %p126 = pneg %p58
        %p127 = pneg %p55
        %p128 = pneg %p84
        %p129 = pneg %p81
        %s130 = sand.u32 %s71, 1
        %s131 = scalar_lea.sflag [#allocation3], %s130
        %s132 = sand.u32 %s71, 1
        %s133 = smul.addr %s132, 8
        %s134 = scalar_lea.vmem [#allocation2], %s133
        %p135 = scmp.lt.s32.totalorder %s16, 1
        %s136 = scalar_select %p135, %s16, 1
        %s137 = smul.addr %s136, 4
        %s138 = scalar_lea.vmem %s0, %s137
        %v140 = vld [vmem:[%s138] sm:$0xf]
        %v141 = vld [vmem:[%s1] sm:$0xf]
        %v142 = vld [vmem:[%s1 + $0x4] sm:$0xf]
        %v143 = vld [vmem:[%s1 + $0x8] sm:$0xf]
        %v144 = vld [vmem:[%s1 + $0xc] sm:$0xf]
        %v149 = vunpack.c.l.b16 %v141
        %v150 = vunpack.c.l.b16 %v142
        %v151 = vunpack.c.l.b16 %v143
        %v152 = vunpack.c.l.b16 %v144
        %v153 = vpack.c.b16 %v150, %v149
        %v154 = vpack.c.b16 %v152, %v151
        %vm157 = vcmask 261120
        %v159 = vsel %vm157, %v140, 0
        %161 = vmatpush.bf16.msra.mxu0 0
        %162 = vmatpush.bf16.msra.mxu0 0
        %163 = vmatpush.bf16.msra.mxu0 0
        %164 = vmatpush.bf16.msra.mxu0 0
        %165 = vmatpush.bf16.msra.mxu0 0
        %166 = vmatpush.bf16.msra.mxu0 0
        %167 = vmatpush.bf16.msra.mxu0 %v154
        %168 = vmatpush.bf16.msra.mxu0 %v153
        %169 = vmatmul.bf16.gmra.mxu0 %v159
        %v170 = vpop.f32.mrf.mxu0
        %v171 = vadd.f32 0.0, %v170
        %v172 = vpop.f32.mrf.mxu0
        %173 = vdwg.mxu0
        %v174 = vlaneseq
        %v175 = vshrl.u32 %v174, 7
        %v176 = vlaneseq
        %v177 = vand.u32 %v176, 127
        %vm178 = vcmp.gt.s32.totalorder %v177, %v175
        %v179 = vpack.c.bf16 %v171, %v171
        %181 = vrot.lane.b32.xlu0 %v179, 96
        %v182 = vpop.permute.xlu0 %181
        %vm183 = vcmask 130048
        %v185 = vsel %vm183, %v179, 0
        %v188 = vsel %vm183, %v182, 0
        %190 = vmatpush.bf16.xpose.msra.mxu0 0
        %191 = vmatpush.bf16.xpose.msra.mxu0 0
        %192 = vmatpush.bf16.xpose.msra.mxu0 0
        %193 = vmatpush.bf16.xpose.msra.mxu0 0
        %194 = vmatpush.bf16.xpose.msra.mxu0 0
        %195 = vmatpush.bf16.xpose.msra.mxu0 0
        %196 = vmatpush.bf16.xpose.msra.mxu0 0
        %197 = vmatpush.bf16.xpose.msra.mxu0 %v188
        %198 = vmatmul.bf16.gmra.mxu0 %v185
        %v199 = vpop.f32.mrf.mxu0
        %v200 = vadd.f32 0.0, %v199
        %v201 = vpop.f32.mrf.mxu0
        %202 = vdwg.mxu0
        %v203 = vsel %vm178, -1e+30, %v200
        %vm204 = vcmask 64512
        %v205 = vsel %vm204, %v203, -inf
        %206 = vmax.xlane.f32.xlu0 %v205
        %v207 = vpop.xlane.xlu0 %206
        %v208 = vsub.f32 %v203, %v207
        %v209 = vmul.f32 %v208, 1.442695
        %v210 = vpow.pop %v209
        %v211 = vsel %vm204, %v210, 0.0
        %212 = vadd.xlane.f32.xlu0 %v211
        %v213 = vpop.xlane.xlu0 %212
        %v214 = vrcp.pop %v213
        %v215 = vmul.f32 %v210, %v214
        %v216 = vpack.c.bf16 %v215, %v215
        %217 = vrot.lane.b32.xlu0 %v179, 64
        %v218 = vpop.permute.xlu0 %217
        %v220 = vsel %vm204, %v216, 0
        %vm222 = vcmask 1043456
        %v224 = vsel %vm222, %v218, 0
        %226 = vmatpush.bf16.msra.mxu0 0
        %227 = vmatpush.bf16.msra.mxu0 0
        %228 = vmatpush.bf16.msra.mxu0 0
        %229 = vmatpush.bf16.msra.mxu0 0
        %230 = vmatpush.bf16.msra.mxu0 0
        %231 = vmatpush.bf16.msra.mxu0 0
        %232 = vmatpush.bf16.msra.mxu0 0
        %233 = vmatpush.bf16.msra.mxu0 %v224
        %234 = vmatmul.bf16.gmra.mxu0 %v220
        %v235 = vpop.f32.mrf.mxu0
        %v236 = vadd.f32 0.0, %v235
        %v237 = vpop.f32.mrf.mxu0
        %238 = vdwg.mxu0
        %239 = vrot.lane.b32.xlu0 %v179, 112
        %v240 = vpop.permute.xlu0 %239
        %241 = vrot.lane.b32.xlu0 %v179, 80
        %v242 = vpop.permute.xlu0 %241
        %v244 = vsel %vm183, %v240, 0
        %v247 = vsel %vm183, %v242, 0
        %249 = vmatpush.bf16.xpose.msra.mxu0 0
        %250 = vmatpush.bf16.xpose.msra.mxu0 0
        %251 = vmatpush.bf16.xpose.msra.mxu0 0
        %252 = vmatpush.bf16.xpose.msra.mxu0 0
        %253 = vmatpush.bf16.xpose.msra.mxu0 0
        %254 = vmatpush.bf16.xpose.msra.mxu0 0
        %255 = vmatpush.bf16.xpose.msra.mxu0 0
        %256 = vmatpush.bf16.xpose.msra.mxu0 %v247
        %257 = vmatmul.bf16.gmra.mxu0 %v244
        %v258 = vpop.f32.mrf.mxu0
        %v259 = vadd.f32 0.0, %v258
        %v260 = vpop.f32.mrf.mxu0
        %261 = vdwg.mxu0
        %v262 = vsel %vm178, -1e+30, %v259
        %v263 = vsel %vm204, %v262, -inf
        %264 = vmax.xlane.f32.xlu0 %v263
        %v265 = vpop.xlane.xlu0 %264
        %v266 = vsub.f32 %v262, %v265
        %v267 = vmul.f32 %v266, 1.442695
        %v268 = vpow.pop %v267
        %v269 = vsel %vm204, %v268, 0.0
        %270 = vadd.xlane.f32.xlu0 %v269
        %v271 = vpop.xlane.xlu0 %270
        %v272 = vrcp.pop %v271
        %v273 = vmul.f32 %v268, %v272
        %v274 = vpack.c.bf16 %v273, %v273
        %275 = vrot.lane.b32.xlu0 %v179, 48
        %v276 = vpop.permute.xlu0 %275
        %v278 = vsel %vm204, %v274, 0
        %v281 = vsel %vm222, %v276, 0
        %283 = vmatpush.bf16.msra.mxu0 0
        %284 = vmatpush.bf16.msra.mxu0 0
        %285 = vmatpush.bf16.msra.mxu0 0
        %286 = vmatpush.bf16.msra.mxu0 0
        %287 = vmatpush.bf16.msra.mxu0 0
        %288 = vmatpush.bf16.msra.mxu0 0
        %289 = vmatpush.bf16.msra.mxu0 0
        %290 = vmatpush.bf16.msra.mxu0 %v281
        %291 = vmatmul.bf16.gmra.mxu0 %v278
        %v292 = vpop.f32.mrf.mxu0
        %v293 = vadd.f32 0.0, %v292
        %v294 = vpop.f32.mrf.mxu0
        %295 = vdwg.mxu0
        %297 = vrot.lane.b32.xlu0 %v293, 16
        %v298 = vpop.permute.xlu0 %297
        %v300 = vsel %vm183, %v236, %v298
        %301 = vst.msk [vmem:[%s134] sm:$0xff] %vm157, %v300
        %s302 = sand.u32 %s71, 1
        %s303 = scalar_lea.sflag [#allocation3], %s302
        %s304 = sand.u32 %s71, 1
        %s305 = smul.addr %s304, 8
        %s306 = scalar_lea.vmem [#allocation2], %s305
        // Predicated region
        $region29: #{multi_head_attention.1} parent=27 // pred_check
          %p307 = pneg %p81
        $region30: #{multi_head_attention.1} parent=27 // pred_check_branch
          %309 = sbr.rel (%p307) target = $region32
        $region31: #{multi_head_attention.1} parent=27 // pred_region
          %311 = vsyncadd %s303, 0
          %s312 = smul.addr %s16, 8
          %s313 = scalar_lea.hbm %s2, %s312
          %s315 = sshll.u32 %s306, 4
          %s316 = int_to_ptr.vmem [resolvable:$true] %s315
          %s317 = sshll.u32 %s313, 4
          %s318 = int_to_ptr.hbm [resolvable:$true] %s317
          %320 = dma.vmem_to_hbm [thread:$0]  %s316, 128, %s318, %s303
        $region32: #{multi_head_attention.1} parent=27 // pred_fallthru
          _
      $region28: #{multi_head_attention.1} parent=5 // pred_fallthru
        _
      %p321 = scmp.le.s32.totalorder 2, %s11
      // Predicated region
      $region33: #{multi_head_attention.1} parent=5 // pred_check
        %p322 = pneg %p321
      $region34: #{multi_head_attention.1} parent=5 // pred_check_branch
        %324 = sbr.rel (%p322) target = $region36
      $region35: #{multi_head_attention.1} parent=5 // pred_region
        %s325 = ssub.s32 %s11, 2
        // Predicated region
        $region37: #{multi_head_attention.1} parent=35 // pred_check
          %p326 = pneg %p87
        $region38: #{multi_head_attention.1} parent=35 // pred_check_branch
          %328 = sbr.rel (%p326) target = $region40
        $region39: #{multi_head_attention.1} parent=35 // pred_region
          %s329 = sand.u32 %s72, 1
          %s330 = scalar_lea.sflag [#allocation3], %s329
          %s331 = sand.u32 %s72, 1
          %s332 = smul.addr %s331, 8
          %s333 = scalar_lea.vmem [#allocation2], %s332
          %335 = dma.done %s330, 128
        $region40: #{multi_head_attention.1} parent=35 // pred_fallthru
          _
      $region36: #{multi_head_attention.1} parent=5 // pred_fallthru
        _
    $region6: #{multi_head_attention.1} parent=1 // loop_footer
      %s15 = sadd.s32 1, %s11
    $region7: #{multi_head_attention.1} parent=1 // loop_footer_branch
      %10 = sbr.rel target = $region3
    $region8: #{multi_head_attention.1} parent=1 // loop_exit
      _
    %336 = vsyncpa [#allocation3], 1
    %s337 = scalar_lea.sflag [#allocation3], 1
    %338 = vsyncpa %s337, 1

</llo_original>
